<compile_context>
chip_gen: v5e
topology: v5e:2x2
jax: 0.10.0
libtpu: 0.0.40
codegen_flags: <defaults>
</compile_context>

<pallas_src>
import jax
import jax.numpy as jnp
from jax import lax
from jax.experimental import pallas as pl
from jax.experimental.pallas import tpu as pltpu

EPS = 1e-5        # nn.GroupNorm default eps
NEG_SLOPE = 0.1   # nn.LeakyReLU(0.1)


def residual_block_kernel(x_ref, w_ref, b_ref, gamma_ref, beta_ref,
                          gmap_ref, gmapt_ref, out_ref, xpad_ref):
    # One batch element per grid step.
    #   x_ref     : (1, H, W*C)    input, lane-dense (W,C packed into lanes), f32
    #   w_ref     : (3, W*C, W*C)  banded conv weights (one per kernel row ky), bf16
    #   b_ref     : (1, W*C)       conv bias tiled over W, f32
    #   gamma_ref : (1, W*C)       GroupNorm scale tiled over W, f32
    #   beta_ref  : (1, W*C)       GroupNorm shift tiled over W, f32
    #   gmap_ref  : (W*C, G)       lane -> group one-hot, pre-scaled by 1/count, f32
    #   gmapt_ref : (G, W*C)       group -> lane one-hot (transpose, unscaled), f32
    #   out_ref   : (1, H, W*C)
    #   xpad_ref  : (H+2, W*C)     f32 VMEM scratch (row-padded input)
    H = x_ref.shape[1]
    WC = x_ref.shape[2]

    x = x_ref[0]                                      # (H, WC) f32

    # ---- in-kernel row padding (column padding is baked into the banded weights) ----
    zero_row = jnp.zeros((1, WC), dtype=xpad_ref.dtype)
    xpad_ref[0:1, :] = zero_row
    xpad_ref[H + 1:H + 2, :] = zero_row
    xpad_ref[1:H + 1, :] = x

    # ---- 3x3 conv as 3 banded (H,WC) x (WC,WC) matmuls: bf16 operands, f32 accumulate ----
    acc = None
    for ky in range(3):
        lhs = xpad_ref[ky:ky + H, :].astype(jnp.bfloat16)
        part = jnp.dot(lhs, w_ref[ky], preferred_element_type=jnp.float32)
        acc = part if acc is None else acc + part     # first tap initializes acc
    y = acc + b_ref[...]                              # (H, WC) f32

    # ---- GroupNorm: one dot to per-group means, one dot back to per-lane stats ----
    colsum = jnp.sum(y, axis=0, keepdims=True)        # (1, WC)
    colsq = jnp.sum(y * y, axis=0, keepdims=True)     # (1, WC)
    stats = jnp.concatenate([colsum, colsq], axis=0)  # (2, WC)
    gstats = jnp.dot(stats, gmap_ref[...],
                     preferred_element_type=jnp.float32)     # (2, G) = per-group E[y], E[y^2]
    back = jnp.dot(gstats, gmapt_ref[...],
                   preferred_element_type=jnp.float32)       # (2, WC)
    mean = back[0:1, :]
    msq = back[1:2, :]
    var = jnp.maximum(msq - mean * mean, 0.0)         # clamp: single-pass var can go tiny-negative
    inv = lax.rsqrt(var + EPS)                        # EUP
    scale = inv * gamma_ref[...]                      # (1, WC) row-vector precompute
    shift = beta_ref[...] - mean * scale              # (1, WC)
    yn = y * scale + shift                            # only 2 ops on the (H, WC) slab

    # ---- LeakyReLU(0.1) + residual add, lane-dense store ----
    act = jnp.maximum(yn, NEG_SLOPE * yn)             # valid because slope < 1
    out_ref[0] = (x + act).astype(out_ref.dtype)


def _prepare_params(w_oihw, b, gamma, beta, H, W, groups):
    """One-time parameter preprocessing (would be cached alongside the weights)."""
    C = w_oihw.shape[0]
    WC = W * C
    wk = jnp.transpose(w_oihw, (2, 3, 1, 0)).astype(jnp.float32)   # (ky, kx, Cin, Cout)
    # W_ky[(w+kx-1)*C + ci, w*C + co] = wk[ky, kx, ci, co]; out-of-range columns are
    # simply absent -> implicit zero padding along W.
    w_banded = []
    for ky in range(3):
        m = jnp.zeros((WC, WC), jnp.float32)
        for kx in range(3):
            m = m + jnp.kron(jnp.eye(W, k=1 - kx, dtype=jnp.float32), wk[ky, kx])
        w_banded.append(m)
    w_banded = jnp.stack(w_banded).astype(jnp.bfloat16)            # (3, WC, WC)

    b_t = jnp.tile(b, W).reshape(1, WC).astype(jnp.float32)
    gamma_t = jnp.tile(gamma, W).reshape(1, WC).astype(jnp.float32)
    beta_t = jnp.tile(beta, W).reshape(1, WC).astype(jnp.float32)

    lane_group = jnp.tile(jnp.arange(C) // (C // groups), W)       # (WC,)
    gmap = (lane_group[:, None] == jnp.arange(groups)[None, :]).astype(jnp.float32)
    count = float(H * W * (C // groups))               # elements per group per sample
    gmap_scaled = gmap / count                         # fold 1/count into the reduce matmul
    return w_banded, b_t, gamma_t, beta_t, gmap_scaled, gmap.T


def residual_block_nhwc(x_nhwc, w_oihw, b, gamma, beta, groups=8):
    """ResidualBlock forward on NHWC input (lane-friendly layout; preferred API)."""
    N, H, W, C = x_nhwc.shape
    WC = W * C
    w_banded, b_t, gamma_t, beta_t, gmap, gmapt = _prepare_params(
        w_oihw, b, gamma, beta, H, W, groups)
    x_packed = x_nhwc.reshape(N, H, WC)        # contiguous reshape: metadata only

    out = pl.pallas_call(
        residual_block_kernel,
        out_shape=jax.ShapeDtypeStruct((N, H, WC), x_nhwc.dtype),
        grid=(N,),
        in_specs=[
            pl.BlockSpec((1, H, WC), lambda n: (n, 0, 0)),        # x
            pl.BlockSpec((3, WC, WC), lambda n: (0, 0, 0)),       # banded conv weights
            pl.BlockSpec((1, WC), lambda n: (0, 0)),              # bias
            pl.BlockSpec((1, WC), lambda n: (0, 0)),              # gamma
            pl.BlockSpec((1, WC), lambda n: (0, 0)),              # beta
            pl.BlockSpec((WC, groups), lambda n: (0, 0)),         # lane->group one-hot (scaled)
            pl.BlockSpec((groups, WC), lambda n: (0, 0)),         # group->lane one-hot
        ],
        out_specs=pl.BlockSpec((1, H, WC), lambda n: (n, 0, 0)),
        scratch_shapes=[pltpu.VMEM((H + 2, WC), jnp.float32)],
        compiler_params=pltpu.CompilerParams(
            dimension_semantics=("parallel",)),    # batch shards across v7x's 2 TCs
    )(x_packed, w_banded, b_t, gamma_t, beta_t, gmap, gmapt)
    return out.reshape(N, H, W, C)


def residual_block(x_nchw, w_oihw, b, gamma, beta, groups=8):
    """NCHW adapter matching the PyTorch module convention (hot path is NHWC above)."""
    x_nhwc = jnp.transpose(x_nchw, (0, 2, 3, 1))
    out = residual_block_nhwc(x_nhwc, w_oihw, b, gamma, beta, groups)
    return jnp.transpose(out, (0, 3, 1, 2))


def residual_block_reference(x_nchw, w_oihw, b, gamma, beta, groups=8):
    """Pure-JAX reference matching the PyTorch module."""
    N, C, H, W = x_nchw.shape
    y = lax.conv_general_dilated(x_nchw, w_oihw, (1, 1), 'SAME',
                                 dimension_numbers=('NCHW', 'OIHW', 'NCHW'))
    y = y + b[None, :, None, None]
    yg = y.reshape(N, groups, C // groups, H, W)
    mean = yg.mean(axis=(2, 3, 4), keepdims=True)
    var = yg.var(axis=(2, 3, 4), keepdims=True)
    yn = (yg - mean) / jnp.sqrt(var + EPS)
    yn = yn.reshape(N, C, H, W) * gamma[None, :, None, None] + beta[None, :, None, None]
    act = jnp.where(yn >= 0, yn, NEG_SLOPE * yn)
    return x_nchw + act


if __name__ == "__main__":
    key = jax.random.PRNGKey(0)
    kx, kw, kb, kg, kbe = jax.random.split(key, 5)

    # GroupNorm(8, C) requires C % 8 == 0 -> C = 16.
    N, C, H, W = 2, 16, 16, 16
    x = jax.random.normal(kx, (N, C, H, W), dtype=jnp.float32)
    w_oihw = 0.1 * jax.random.normal(kw, (C, C, 3, 3), dtype=jnp.float32)
    b = 0.1 * jax.random.normal(kb, (C,), dtype=jnp.float32)
    gamma = 1.0 + 0.1 * jax.random.normal(kg, (C,), dtype=jnp.float32)
    beta = 0.1 * jax.random.normal(kbe, (C,), dtype=jnp.float32)

    out = residual_block(x, w_oihw, b, gamma, beta, groups=8)
    jax.block_until_ready(out)

    ref = residual_block_reference(x, w_oihw, b, gamma, beta, groups=8)
    assert out.shape == ref.shape == (N, C, H, W)
    # bf16 MXU operands (f32 accumulation) -> slightly looser tolerance than pure f32.
    max_err = float(jnp.max(jnp.abs(out - ref)))
    assert jnp.allclose(out, ref, rtol=2e-2, atol=2e-2), f"mismatch vs reference, max|err|={max_err}"

    print("KERNEL_OK")
</pallas_src>

<mosaic_0001>
module attributes {stable_mosaic.version = 11 : i64} {
  func.func @residual_block_kernel(%arg0: i32, %arg1: memref<1x16x256xf32, #tpu.memory_space<vmem>>, %arg2: memref<3x256x256xbf16, #tpu.memory_space<vmem>>, %arg3: memref<1x256xf32, #tpu.memory_space<vmem>>, %arg4: memref<1x256xf32, #tpu.memory_space<vmem>>, %arg5: memref<1x256xf32, #tpu.memory_space<vmem>>, %arg6: memref<256x8xf32, #tpu.memory_space<vmem>>, %arg7: memref<8x256xf32, #tpu.memory_space<vmem>>, %arg8: memref<1x16x256xf32, #tpu.memory_space<vmem>>, %arg9: memref<18x256xf32, #tpu.memory_space<vmem>>) attributes {dimension_semantics = [#tpu.dimension_semantics<parallel>], iteration_bounds = array<i64: 2>, scalar_prefetch = 0 : i64, scratch_operands = 1 : i64, tpu.core_type = #tpu.core_type<tc>, window_params = [{transform_indices = @transform_0, window_bounds = array<i64: 1, 16, 256>}, {pipeline_mode = #tpu.pipeline_mode<synchronous>, transform_indices = @transform_1, window_bounds = array<i64: 3, 256, 256>}, {pipeline_mode = #tpu.pipeline_mode<synchronous>, transform_indices = @transform_2, window_bounds = array<i64: 1, 256>}, {pipeline_mode = #tpu.pipeline_mode<synchronous>, transform_indices = @transform_3, window_bounds = array<i64: 1, 256>}, {pipeline_mode = #tpu.pipeline_mode<synchronous>, transform_indices = @transform_4, window_bounds = array<i64: 1, 256>}, {pipeline_mode = #tpu.pipeline_mode<synchronous>, transform_indices = @transform_5, window_bounds = array<i64: 256, 8>}, {pipeline_mode = #tpu.pipeline_mode<synchronous>, transform_indices = @transform_6, window_bounds = array<i64: 8, 256>}, {transform_indices = @transform_7, window_bounds = array<i64: 1, 16, 256>}]} {
    %c0 = arith.constant 0 : index
    %c0_0 = arith.constant 0 : index
    %c0_1 = arith.constant 0 : index
    %0 = vector.load %arg1[%c0, %c0_0, %c0_1] : memref<1x16x256xf32, #tpu.memory_space<vmem>>, vector<1x16x256xf32>
    %1 = vector.shape_cast %0 : vector<1x16x256xf32> to vector<16x256xf32>
    %cst = arith.constant 0.000000e+00 : f32
    %2 = vector.broadcast %cst : f32 to vector<1x256xf32>
    %c0_2 = arith.constant 0 : index
    %c0_3 = arith.constant 0 : index
    %3 = vector.load %arg9[%c0_2, %c0_3] : memref<18x256xf32, #tpu.memory_space<vmem>>, vector<1x256xf32>
    tpu.vector_store %arg9[%c0_2, %c0_3], %2 {strides = array<i32>} : memref<18x256xf32, #tpu.memory_space<vmem>>, vector<1x256xf32>,
    %c17 = arith.constant 17 : index
    %c0_4 = arith.constant 0 : index
    %4 = vector.load %arg9[%c17, %c0_4] : memref<18x256xf32, #tpu.memory_space<vmem>>, vector<1x256xf32>
    tpu.vector_store %arg9[%c17, %c0_4], %2 {strides = array<i32>} : memref<18x256xf32, #tpu.memory_space<vmem>>, vector<1x256xf32>,
    %c1 = arith.constant 1 : index
    %c0_5 = arith.constant 0 : index
    %5 = vector.load %arg9[%c1, %c0_5] : memref<18x256xf32, #tpu.memory_space<vmem>>, vector<16x256xf32>
    tpu.vector_store %arg9[%c1, %c0_5], %1 {strides = array<i32>} : memref<18x256xf32, #tpu.memory_space<vmem>>, vector<16x256xf32>,
    %c0_6 = arith.constant 0 : index
    %c0_7 = arith.constant 0 : index
    %6 = vector.load %arg9[%c0_6, %c0_7] : memref<18x256xf32, #tpu.memory_space<vmem>>, vector<16x256xf32>
    %7 = arith.truncf %6 : vector<16x256xf32> to vector<16x256xbf16>
    %c0_8 = arith.constant 0 : index
    %c0_9 = arith.constant 0 : index
    %c0_10 = arith.constant 0 : index
    %8 = vector.load %arg2[%c0_8, %c0_9, %c0_10] : memref<3x256x256xbf16, #tpu.memory_space<vmem>>, vector<1x256x256xbf16>
    %9 = vector.shape_cast %8 : vector<1x256x256xbf16> to vector<256x256xbf16>
    %cst_11 = arith.constant dense<0.000000e+00> : vector<16x256xf32>
    %10 = tpu.matmul %7, %9, %cst_11 {dimension_numbers = #tpu.dot_dimension_numbers<[1], [0], [0], [1], [0, 0, 1, 1], [], []>} : vector<16x256xbf16>, vector<256x256xbf16>, vector<16x256xf32> -> vector<16x256xf32>
    %c1_12 = arith.constant 1 : index
    %c0_13 = arith.constant 0 : index
    %11 = vector.load %arg9[%c1_12, %c0_13] : memref<18x256xf32, #tpu.memory_space<vmem>>, vector<16x256xf32>
    %12 = arith.truncf %11 : vector<16x256xf32> to vector<16x256xbf16>
    %c1_14 = arith.constant 1 : index
    %c0_15 = arith.constant 0 : index
    %c0_16 = arith.constant 0 : index
    %13 = vector.load %arg2[%c1_14, %c0_15, %c0_16] : memref<3x256x256xbf16, #tpu.memory_space<vmem>>, vector<1x256x256xbf16>
    %14 = vector.shape_cast %13 : vector<1x256x256xbf16> to vector<256x256xbf16>
    %cst_17 = arith.constant dense<0.000000e+00> : vector<16x256xf32>
    %15 = tpu.matmul %12, %14, %cst_17 {dimension_numbers = #tpu.dot_dimension_numbers<[1], [0], [0], [1], [0, 0, 1, 1], [], []>} : vector<16x256xbf16>, vector<256x256xbf16>, vector<16x256xf32> -> vector<16x256xf32>
    %16 = arith.addf %10, %15 : vector<16x256xf32>
    %c2 = arith.constant 2 : index
    %c0_18 = arith.constant 0 : index
    %17 = vector.load %arg9[%c2, %c0_18] : memref<18x256xf32, #tpu.memory_space<vmem>>, vector<16x256xf32>
    %18 = arith.truncf %17 : vector<16x256xf32> to vector<16x256xbf16>
    %c2_19 = arith.constant 2 : index
    %c0_20 = arith.constant 0 : index
    %c0_21 = arith.constant 0 : index
    %19 = vector.load %arg2[%c2_19, %c0_20, %c0_21] : memref<3x256x256xbf16, #tpu.memory_space<vmem>>, vector<1x256x256xbf16>
    %20 = vector.shape_cast %19 : vector<1x256x256xbf16> to vector<256x256xbf16>
    %cst_22 = arith.constant dense<0.000000e+00> : vector<16x256xf32>
    %21 = tpu.matmul %18, %20, %cst_22 {dimension_numbers = #tpu.dot_dimension_numbers<[1], [0], [0], [1], [0, 0, 1, 1], [], []>} : vector<16x256xbf16>, vector<256x256xbf16>, vector<16x256xf32> -> vector<16x256xf32>
    %22 = arith.addf %16, %21 : vector<16x256xf32>
    %c0_23 = arith.constant 0 : index
    %c0_24 = arith.constant 0 : index
    %23 = vector.load %arg3[%c0_23, %c0_24] : memref<1x256xf32, #tpu.memory_space<vmem>>, vector<1x256xf32>
    %24 = vector.broadcast %23 : vector<1x256xf32> to vector<16x256xf32>
    %25 = arith.addf %22, %24 : vector<16x256xf32>
    %cst_25 = arith.constant dense<0.000000e+00> : vector<256xf32>
    %26 = vector.multi_reduction <add>, %25, %cst_25 [0] : vector<16x256xf32> to vector<256xf32>
    %27 = vector.shape_cast %26 : vector<256xf32> to vector<1x256xf32>
    %28 = arith.mulf %25, %25 : vector<16x256xf32>
    %cst_26 = arith.constant dense<0.000000e+00> : vector<256xf32>
    %29 = vector.multi_reduction <add>, %28, %cst_26 [0] : vector<16x256xf32> to vector<256xf32>
    %30 = vector.shape_cast %29 : vector<256xf32> to vector<1x256xf32>
    %31 = tpu.concatenate %27, %30 in 0 : vector<1x256xf32>, vector<1x256xf32> -> vector<2x256xf32>
    %c0_27 = arith.constant 0 : index
    %c0_28 = arith.constant 0 : index
    %32 = vector.load %arg6[%c0_27, %c0_28] : memref<256x8xf32, #tpu.memory_space<vmem>>, vector<256x8xf32>
    %cst_29 = arith.constant dense<0.000000e+00> : vector<2x8xf32>
    %33 = tpu.matmul %31, %32, %cst_29 {dimension_numbers = #tpu.dot_dimension_numbers<[1], [0], [0], [1], [0, 0, 1, 1], [], []>} : vector<2x256xf32>, vector<256x8xf32>, vector<2x8xf32> -> vector<2x8xf32>
    %c0_30 = arith.constant 0 : index
    %c0_31 = arith.constant 0 : index
    %34 = vector.load %arg7[%c0_30, %c0_31] : memref<8x256xf32, #tpu.memory_space<vmem>>, vector<8x256xf32>
    %cst_32 = arith.constant dense<0.000000e+00> : vector<2x256xf32>
    %35 = tpu.matmul %33, %34, %cst_32 {dimension_numbers = #tpu.dot_dimension_numbers<[1], [0], [0], [1], [0, 0, 1, 1], [], []>} : vector<2x8xf32>, vector<8x256xf32>, vector<2x256xf32> -> vector<2x256xf32>
    %36 = vector.extract_strided_slice %35 {offsets = [0, 0], sizes = [1, 256], strides = [1, 1]} : vector<2x256xf32> to vector<1x256xf32>
    %37 = vector.extract_strided_slice %35 {offsets = [1, 0], sizes = [1, 256], strides = [1, 1]} : vector<2x256xf32> to vector<1x256xf32>
    %38 = arith.mulf %36, %36 : vector<1x256xf32>
    %39 = arith.subf %37, %38 : vector<1x256xf32>
    %cst_33 = arith.constant 0.000000e+00 : f32
    %40 = vector.broadcast %cst_33 : f32 to vector<1x256xf32>
    %41 = arith.maximumf %39, %40 : vector<1x256xf32>
    %cst_34 = arith.constant 9.99999974E-6 : f32
    %42 = vector.broadcast %cst_34 : f32 to vector<1x256xf32>
    %43 = arith.addf %41, %42 : vector<1x256xf32>
    %44 = math.rsqrt %43 : vector<1x256xf32>
    %c0_35 = arith.constant 0 : index
    %c0_36 = arith.constant 0 : index
    %45 = vector.load %arg4[%c0_35, %c0_36] : memref<1x256xf32, #tpu.memory_space<vmem>>, vector<1x256xf32>
    %46 = arith.mulf %44, %45 : vector<1x256xf32>
    %c0_37 = arith.constant 0 : index
    %c0_38 = arith.constant 0 : index
    %47 = vector.load %arg5[%c0_37, %c0_38] : memref<1x256xf32, #tpu.memory_space<vmem>>, vector<1x256xf32>
    %48 = arith.mulf %36, %46 : vector<1x256xf32>
    %49 = arith.subf %47, %48 : vector<1x256xf32>
    %50 = vector.broadcast %46 : vector<1x256xf32> to vector<16x256xf32>
    %51 = arith.mulf %25, %50 : vector<16x256xf32>
    %52 = vector.broadcast %49 : vector<1x256xf32> to vector<16x256xf32>
    %53 = arith.addf %51, %52 : vector<16x256xf32>
    %cst_39 = arith.constant 1.000000e-01 : f32
    %54 = vector.broadcast %cst_39 : f32 to vector<16x256xf32>
    %55 = arith.mulf %54, %53 : vector<16x256xf32>
    %56 = arith.maximumf %53, %55 : vector<16x256xf32>
    %57 = arith.addf %1, %56 : vector<16x256xf32>
    %c0_40 = arith.constant 0 : index
    %c0_41 = arith.constant 0 : index
    %c0_42 = arith.constant 0 : index
    %58 = vector.load %arg8[%c0_40, %c0_41, %c0_42] : memref<1x16x256xf32, #tpu.memory_space<vmem>>, vector<1x16x256xf32>
    %59 = vector.shape_cast %58 : vector<1x16x256xf32> to vector<16x256xf32>
    %60 = vector.shape_cast %57 : vector<16x256xf32> to vector<1x16x256xf32>
    tpu.vector_store %arg8[%c0_40, %c0_41, %c0_42], %60 {strides = array<i32>} : memref<1x16x256xf32, #tpu.memory_space<vmem>>, vector<1x16x256xf32>,
    return
  }
  func.func @transform_0(%arg0: i32) -> (i32, i32, i32) {
    %c0_i32 = arith.constant 0 : i32
    %c0_i32_0 = arith.constant 0 : i32
    %c0_i32_1 = arith.constant 0 : i32
    return %arg0, %c0_i32, %c0_i32_0 : i32, i32, i32
  }
  func.func @transform_1(%arg0: i32) -> (i32, i32, i32) {
    %c0_i32 = arith.constant 0 : i32
    %c0_i32_0 = arith.constant 0 : i32
    %c0_i32_1 = arith.constant 0 : i32
    %c0_i32_2 = arith.constant 0 : i32
    return %c0_i32, %c0_i32_0, %c0_i32_1 : i32, i32, i32
  }
  func.func @transform_2(%arg0: i32) -> (i32, i32) {
    %c0_i32 = arith.constant 0 : i32
    %c0_i32_0 = arith.constant 0 : i32
    %c0_i32_1 = arith.constant 0 : i32
    return %c0_i32, %c0_i32_0 : i32, i32
  }
  func.func @transform_3(%arg0: i32) -> (i32, i32) {
    %c0_i32 = arith.constant 0 : i32
    %c0_i32_0 = arith.constant 0 : i32
    %c0_i32_1 = arith.constant 0 : i32
    return %c0_i32, %c0_i32_0 : i32, i32
  }
  func.func @transform_4(%arg0: i32) -> (i32, i32) {
    %c0_i32 = arith.constant 0 : i32
    %c0_i32_0 = arith.constant 0 : i32
    %c0_i32_1 = arith.constant 0 : i32
    return %c0_i32, %c0_i32_0 : i32, i32
  }
  func.func @transform_5(%arg0: i32) -> (i32, i32) {
    %c0_i32 = arith.constant 0 : i32
    %c0_i32_0 = arith.constant 0 : i32
    %c0_i32_1 = arith.constant 0 : i32
    return %c0_i32, %c0_i32_0 : i32, i32
  }
  func.func @transform_6(%arg0: i32) -> (i32, i32) {
    %c0_i32 = arith.constant 0 : i32
    %c0_i32_0 = arith.constant 0 : i32
    %c0_i32_1 = arith.constant 0 : i32
    return %c0_i32, %c0_i32_0 : i32, i32
  }
  func.func @transform_7(%arg0: i32) -> (i32, i32, i32) {
    %c0_i32 = arith.constant 0 : i32
    %c0_i32_0 = arith.constant 0 : i32
    %c0_i32_1 = arith.constant 0 : i32
    return %arg0, %c0_i32, %c0_i32_0 : i32, i32, i32
  }
}

</mosaic_0001>

<llo_original>
// kernel: tpu_custom_call.1
$region0: #{tpu_custom_call.1}
  #allocation0 [shape = 'u32[]', space=smem, size = 0x4, offset = 0x4, fixed_abs, tag = 'smem constant byte address 0x4 - core index']
  #allocation1 [shape = 'u32[72,128]{1,0:T(1,128)}', space=vmem, size = 0x9000, scoped, tag = 'internal scratch']
  #allocation2 [shape = 'f32[18,256]{1,0:T(8,128)}', space=vmem, size = 0x6000, scoped, tag = 'scratch operand']
  %s0 = inlined_call_operand.vmem [shape: f32[2,16,256], index: 0, kind: input, shape index: {}]
  %s1 = inlined_call_operand.hbm [shape: bf16[3,256,256], index: 1, kind: input, shape index: {}]
  %s2 = inlined_call_operand.vmem [shape: f32[1,256], index: 2, kind: input, shape index: {}]
  %s3 = inlined_call_operand.vmem [shape: f32[1,256], index: 3, kind: input, shape index: {}]
  %s4 = inlined_call_operand.vmem [shape: f32[1,256], index: 4, kind: input, shape index: {}]
  %s5 = inlined_call_operand.vmem [shape: f32[256,8], index: 5, kind: input, shape index: {}]
  %s6 = inlined_call_operand.vmem [shape: f32[8,256], index: 6, kind: input, shape index: {}]
  %s7 = inlined_call_operand.hbm [shape: f32[2,16,256], index: 7, kind: output, shape index: {}]
  %s8 = sld [smem:[#allocation0]]
  $region65: #{tpu_custom_call.1} parent=0
    _
  %s10 = ssub.s32 1, %s8
  %s11 = scalar_select 0, %s10, %s8
  $region1: #{tpu_custom_call.1} parent=0
    #allocation3 [shape = 'u8[393216]{0}', space=vmem, size = 0x60000, scoped, tag = 'input window, operand 1, single buffered']
    #allocation4 [shape = 's32[2]{0}', space=sflag, size = 0x8, scoped, tag = 'scoped memory for tpu_custom_call.1']
    #allocation5 [shape = 's32[2]{0}', space=sflag, size = 0x8, scoped, tag = 'scoped memory for tpu_custom_call.1']
    #allocation6 [shape = 'u8[32768]{0}', space=vmem, size = 0x8000, scoped, tag = 'output window, operand 0']
    %12 = vsyncpa [#allocation4], 0
    %13 = vsyncpa [#allocation5], 0
    %s14 = scalar_lea.sflag [#allocation5], 1
    %15 = vsyncpa %s14, 0
    loop: start=0, step=1, limit=4
    $region2: #{tpu_custom_call.1} parent=1 // loop_pre_header
      _
    $region3: #{tpu_custom_call.1} parent=1 // loop_header
      %s17 = sphi 0, %s21
      %p18 = scmp.ge.s32.totalorder %s17, 4
      %s27 = sphi 0, %s29
      %s30 = sphi 0, %s27
      %s31 = sphi 0, %s30
      %s47 = sphi 0, %s31
      %s51 = sphi 0, %s51
      %s53 = sphi 0, %s51
      %s54 = sphi 0, %s53
      %s68 = sphi 0, %s54
      %s72 = sphi 0, %s72
      %s74 = sphi 0, %s72
      %s75 = sphi 0, %s74
      %s89 = sphi 0, %s75
      %s93 = sphi 0, %s93
      %s95 = sphi 0, %s93
      %s96 = sphi 0, %s95
      %s110 = sphi 0, %s96
      %s114 = sphi 0, %s114
      %s116 = sphi 0, %s114
      %s117 = sphi 0, %s116
      %s131 = sphi 0, %s117
      %s135 = sphi 0, %s135
      %s137 = sphi 0, %s135
      %s138 = sphi 0, %s137
      %s152 = sphi 0, %s138
      %s156 = sphi 0, %s156
      %s158 = sphi 0, %s156
      %s159 = sphi 0, %s158
      %s173 = sphi 0, %s159
      %s179 = sphi 0, %s181
      %s182 = sphi 0, %s179
      %s183 = sphi 0, %s182
      %s199 = sphi 0, %s183
    $region4: #{tpu_custom_call.1} parent=1 // loop_header_branch
      %20 = sbr.rel (%p18) target = $region8
    $region5: #{tpu_custom_call.1} parent=1 // loop_body
      %s22 = ssub.s32 %s17, 1
      %s23 = ssub.s32 %s17, 2
      %s24 = sadd.s32 %s17, 1
      %s25 = ssub.s32 %s17, %s24
      %p26 = scmp.eq.s32.totalorder %s25, 0
      %s28 = sadd.s32 %s27, 1
      %s29 = scalar_select %p26, %s27, %s28
      %p32 = pneg %p26
      %p33 = scmp.eq.s32.totalorder %s17, 1
      %p34 = por %p32, %p33
      %p35 = scmp.ne.s32.totalorder %s27, %s30
      %p36 = scmp.eq.s32.totalorder %s17, 0
      %p37 = por %p35, %p36
      %p38 = scmp.ne.s32.totalorder %s27, %s30
      %p39 = scmp.eq.s32.totalorder %s22, 1
      %p40 = por %p38, %p39
      %p41 = scmp.ne.s32.totalorder %s30, %s31
      %p42 = scmp.eq.s32.totalorder %s22, 0
      %p43 = por %p41, %p42
      %p44 = scmp.ne.s32.totalorder %s30, %s31
      %p45 = scmp.eq.s32.totalorder %s23, 1
      %p46 = por %p44, %p45
      %p48 = scmp.ne.s32.totalorder %s31, %s47
      %p49 = scmp.eq.s32.totalorder %s23, 0
      %p50 = por %p48, %p49
      %s52 = sadd.s32 %s51, 1
      %p55 = scmp.eq.s32.totalorder %s17, 1
      %p56 = scmp.ne.s32.totalorder %s51, %s53
      %p57 = scmp.eq.s32.totalorder %s17, 0
      %p58 = por %p56, %p57
      %p59 = scmp.ne.s32.totalorder %s51, %s53
      %p60 = scmp.eq.s32.totalorder %s22, 1
      %p61 = por %p59, %p60
      %p62 = scmp.ne.s32.totalorder %s53, %s54
      %p63 = scmp.eq.s32.totalorder %s22, 0
      %p64 = por %p62, %p63
      %p65 = scmp.ne.s32.totalorder %s53, %s54
      %p66 = scmp.eq.s32.totalorder %s23, 1
      %p67 = por %p65, %p66
      %p69 = scmp.ne.s32.totalorder %s54, %s68
      %p70 = scmp.eq.s32.totalorder %s23, 0
      %p71 = por %p69, %p70
      %s73 = sadd.s32 %s72, 1
      %p76 = scmp.eq.s32.totalorder %s17, 1
      %p77 = scmp.ne.s32.totalorder %s72, %s74
      %p78 = scmp.eq.s32.totalorder %s17, 0
      %p79 = por %p77, %p78
      %p80 = scmp.ne.s32.totalorder %s72, %s74
      %p81 = scmp.eq.s32.totalorder %s22, 1
      %p82 = por %p80, %p81
      %p83 = scmp.ne.s32.totalorder %s74, %s75
      %p84 = scmp.eq.s32.totalorder %s22, 0
      %p85 = por %p83, %p84
      %p86 = scmp.ne.s32.totalorder %s74, %s75
      %p87 = scmp.eq.s32.totalorder %s23, 1
      %p88 = por %p86, %p87
      %p90 = scmp.ne.s32.totalorder %s75, %s89
      %p91 = scmp.eq.s32.totalorder %s23, 0
      %p92 = por %p90, %p91
      %s94 = sadd.s32 %s93, 1
      %p97 = scmp.eq.s32.totalorder %s17, 1
      %p98 = scmp.ne.s32.totalorder %s93, %s95
      %p99 = scmp.eq.s32.totalorder %s17, 0
      %p100 = por %p98, %p99
      %p101 = scmp.ne.s32.totalorder %s93, %s95
      %p102 = scmp.eq.s32.totalorder %s22, 1
      %p103 = por %p101, %p102
      %p104 = scmp.ne.s32.totalorder %s95, %s96
      %p105 = scmp.eq.s32.totalorder %s22, 0
      %p106 = por %p104, %p105
      %p107 = scmp.ne.s32.totalorder %s95, %s96
      %p108 = scmp.eq.s32.totalorder %s23, 1
      %p109 = por %p107, %p108
      %p111 = scmp.ne.s32.totalorder %s96, %s110
      %p112 = scmp.eq.s32.totalorder %s23, 0
      %p113 = por %p111, %p112
      %s115 = sadd.s32 %s114, 1
      %p118 = scmp.eq.s32.totalorder %s17, 1
      %p119 = scmp.ne.s32.totalorder %s114, %s116
      %p120 = scmp.eq.s32.totalorder %s17, 0
      %p121 = por %p119, %p120
      %p122 = scmp.ne.s32.totalorder %s114, %s116
      %p123 = scmp.eq.s32.totalorder %s22, 1
      %p124 = por %p122, %p123
      %p125 = scmp.ne.s32.totalorder %s116, %s117
      %p126 = scmp.eq.s32.totalorder %s22, 0
      %p127 = por %p125, %p126
      %p128 = scmp.ne.s32.totalorder %s116, %s117
      %p129 = scmp.eq.s32.totalorder %s23, 1
      %p130 = por %p128, %p129
      %p132 = scmp.ne.s32.totalorder %s117, %s131
      %p133 = scmp.eq.s32.totalorder %s23, 0
      %p134 = por %p132, %p133
      %s136 = sadd.s32 %s135, 1
      %p139 = scmp.eq.s32.totalorder %s17, 1
      %p140 = scmp.ne.s32.totalorder %s135, %s137
      %p141 = scmp.eq.s32.totalorder %s17, 0
      %p142 = por %p140, %p141
      %p143 = scmp.ne.s32.totalorder %s135, %s137
      %p144 = scmp.eq.s32.totalorder %s22, 1
      %p145 = por %p143, %p144
      %p146 = scmp.ne.s32.totalorder %s137, %s138
      %p147 = scmp.eq.s32.totalorder %s22, 0
      %p148 = por %p146, %p147
      %p149 = scmp.ne.s32.totalorder %s137, %s138
      %p150 = scmp.eq.s32.totalorder %s23, 1
      %p151 = por %p149, %p150
      %p153 = scmp.ne.s32.totalorder %s138, %s152
      %p154 = scmp.eq.s32.totalorder %s23, 0
      %p155 = por %p153, %p154
      %s157 = sadd.s32 %s156, 1
      %p160 = scmp.eq.s32.totalorder %s17, 1
      %p161 = scmp.ne.s32.totalorder %s156, %s158
      %p162 = scmp.eq.s32.totalorder %s17, 0
      %p163 = por %p161, %p162
      %p164 = scmp.ne.s32.totalorder %s156, %s158
      %p165 = scmp.eq.s32.totalorder %s22, 1
      %p166 = por %p164, %p165
      %p167 = scmp.ne.s32.totalorder %s158, %s159
      %p168 = scmp.eq.s32.totalorder %s22, 0
      %p169 = por %p167, %p168
      %p170 = scmp.ne.s32.totalorder %s158, %s159
      %p171 = scmp.eq.s32.totalorder %s23, 1
      %p172 = por %p170, %p171
      %p174 = scmp.ne.s32.totalorder %s159, %s173
      %p175 = scmp.eq.s32.totalorder %s23, 0
      %p176 = por %p174, %p175
      %s177 = ssub.s32 %s17, %s24
      %p178 = scmp.eq.s32.totalorder %s177, 0
      %s180 = sadd.s32 %s179, 1
      %s181 = scalar_select %p178, %s179, %s180
      %p184 = pneg %p178
      %p185 = scmp.eq.s32.totalorder %s17, 1
      %p186 = por %p184, %p185
      %p187 = scmp.ne.s32.totalorder %s179, %s182
      %p188 = scmp.eq.s32.totalorder %s17, 0
      %p189 = por %p187, %p188
      %p190 = scmp.ne.s32.totalorder %s179, %s182
      %p191 = scmp.eq.s32.totalorder %s22, 1
      %p192 = por %p190, %p191
      %p193 = scmp.ne.s32.totalorder %s182, %s183
      %p194 = scmp.eq.s32.totalorder %s22, 0
      %p195 = por %p193, %p194
      %p196 = scmp.ne.s32.totalorder %s182, %s183
      %p197 = scmp.eq.s32.totalorder %s23, 1
      %p198 = por %p196, %p197
      %p200 = scmp.ne.s32.totalorder %s183, %s199
      %p201 = scmp.eq.s32.totalorder %s23, 0
      %p202 = por %p200, %p201
      %p203 = scmp.le.s32.totalorder 1, %s17
      %p204 = scmp.lt.s32.totalorder %s17, 3
      %p205 = pnand %p203, %p204
      %p206 = pneg %p205
      // Predicated region
      $region9: #{tpu_custom_call.1} parent=5 // pred_check
        _
      $region10: #{tpu_custom_call.1} parent=5 // pred_check_branch
        %208 = sbr.rel (%p205) target = $region12
      $region11: #{tpu_custom_call.1} parent=5 // pred_region
        %s209 = ssub.s32 %s17, 1
        // Predicated region
        $region13: #{tpu_custom_call.1} parent=11 // pred_check
          %p210 = pneg %p64
        $region14: #{tpu_custom_call.1} parent=11 // pred_check_branch
          %212 = sbr.rel (%p210) target = $region16
        $region15: #{tpu_custom_call.1} parent=11 // pred_region
          %214 = vsyncadd [#allocation4], 0
          %s215 = sshll.u32 %s1, 4
          %s216 = int_to_ptr.hbm [resolvable:$true] %s215
          %s217 = sshll.u32 [#allocation3], 4
          %s218 = int_to_ptr.vmem [resolvable:$true] %s217
          %223 = dma.hbm_to_vmem [thread:$0]  %s216, 12288, %s218, [#allocation4], 128, 128, 8
        $region16: #{tpu_custom_call.1} parent=11 // pred_fallthru
          _
        // Predicated region
        $region17: #{tpu_custom_call.1} parent=11 // pred_check
          %p224 = pneg %p85
        $region18: #{tpu_custom_call.1} parent=11 // pred_check_branch
          %226 = sbr.rel (%p224) target = $region20
        $region19: #{tpu_custom_call.1} parent=11 // pred_region
          _
        $region20: #{tpu_custom_call.1} parent=11 // pred_fallthru
          _
        // Predicated region
        $region21: #{tpu_custom_call.1} parent=11 // pred_check
          %p227 = pneg %p106
        $region22: #{tpu_custom_call.1} parent=11 // pred_check_branch
          %229 = sbr.rel (%p227) target = $region24
        $region23: #{tpu_custom_call.1} parent=11 // pred_region
          _
        $region24: #{tpu_custom_call.1} parent=11 // pred_fallthru
          _
        // Predicated region
        $region25: #{tpu_custom_call.1} parent=11 // pred_check
          %p230 = pneg %p127
        $region26: #{tpu_custom_call.1} parent=11 // pred_check_branch
          %232 = sbr.rel (%p230) target = $region28
        $region27: #{tpu_custom_call.1} parent=11 // pred_region
          _
        $region28: #{tpu_custom_call.1} parent=11 // pred_fallthru
          _
        // Predicated region
        $region29: #{tpu_custom_call.1} parent=11 // pred_check
          %p233 = pneg %p148
        $region30: #{tpu_custom_call.1} parent=11 // pred_check_branch
          %235 = sbr.rel (%p233) target = $region32
        $region31: #{tpu_custom_call.1} parent=11 // pred_region
          _
        $region32: #{tpu_custom_call.1} parent=11 // pred_fallthru
          _
        // Predicated region
        $region33: #{tpu_custom_call.1} parent=11 // pred_check
          %p236 = pneg %p169
        $region34: #{tpu_custom_call.1} parent=11 // pred_check_branch
          %238 = sbr.rel (%p236) target = $region36
        $region35: #{tpu_custom_call.1} parent=11 // pred_region
          _
        $region36: #{tpu_custom_call.1} parent=11 // pred_fallthru
          _
      $region12: #{tpu_custom_call.1} parent=5 // pred_fallthru
        _
      %p239 = scmp.lt.s32.totalorder %s17, 2
      // Predicated region
      $region37: #{tpu_custom_call.1} parent=5 // pred_check
        %p240 = pneg %p239
      $region38: #{tpu_custom_call.1} parent=5 // pred_check_branch
        %242 = sbr.rel (%p240) target = $region40
      $region39: #{tpu_custom_call.1} parent=5 // pred_region
        // Predicated region
        $region41: #{tpu_custom_call.1} parent=39 // pred_check
          %p243 = pneg %p37
        $region42: #{tpu_custom_call.1} parent=39 // pred_check_branch
          %245 = sbr.rel (%p243) target = $region44
        $region43: #{tpu_custom_call.1} parent=39 // pred_region
          %p246 = scmp.lt.s32.totalorder %s17, 1
          %s247 = scalar_select %p246, %s17, 1
          %s248 = smul.addr %s247, 4
          %s249 = smul.addr %s248, 8
          %s250 = scalar_lea.vmem %s0, %s249
        $region44: #{tpu_custom_call.1} parent=39 // pred_fallthru
          _
      $region40: #{tpu_custom_call.1} parent=5 // pred_fallthru
        _
      %p251 = scmp.le.s32.totalorder 1, %s17
      %p252 = scmp.lt.s32.totalorder %s17, 3
      %p253 = pnand %p251, %p252
      %p254 = pneg %p253
      // Predicated region
      $region45: #{tpu_custom_call.1} parent=5 // pred_check
        _
      $region46: #{tpu_custom_call.1} parent=5 // pred_check_branch
        %256 = sbr.rel (%p253) target = $region48
      $region47: #{tpu_custom_call.1} parent=5 // pred_region
        %s257 = ssub.s32 %s17, 1
        // Predicated region
        $region49: #{tpu_custom_call.1} parent=47 // pred_check
          %p258 = pneg %p64
        $region50: #{tpu_custom_call.1} parent=47 // pred_check_branch
          %260 = sbr.rel (%p258) target = $region52
        $region51: #{tpu_custom_call.1} parent=47 // pred_region
          %262 = dma.done [#allocation4], 12288
        $region52: #{tpu_custom_call.1} parent=47 // pred_fallthru
          _
        %p263 = scmp.lt.s32.totalorder %s22, 1
        %s264 = scalar_select %p263, %s22, 1
        %s265 = smul.addr %s264, 4
        %s266 = smul.addr %s265, 8
        %s267 = scalar_lea.vmem %s0, %s266
        %p268 = pneg %p43
        %p269 = pneg %p40
        %p270 = pneg %p64
        %p271 = pneg %p61
        %p272 = pneg %p85
        %p273 = pneg %p82
        %p274 = pneg %p106
        %p275 = pneg %p103
        %p276 = pneg %p127
        %p277 = pneg %p124
        %p278 = pneg %p148
        %p279 = pneg %p145
        %p280 = pneg %p169
        %p281 = pneg %p166
        %p282 = pneg %p195
        %p283 = pneg %p192
        %s284 = sand.u32 %s182, 1
        %s285 = scalar_lea.sflag [#allocation5], %s284
        %s286 = sand.u32 %s182, 1
        %s287 = smul.addr %s286, 32
        %s288 = scalar_lea.vmem [#allocation6], %s287
        %p289 = scmp.lt.s32.totalorder %s22, 1
        %s290 = scalar_select %p289, %s22, 1
        %s291 = smul.addr %s290, 4
        %s292 = smul.addr %s291, 8
        %s293 = scalar_lea.vmem %s0, %s292
        %v294 = vld [vmem:[%s293] sm:$0xff]
        %v295 = vld [vmem:[%s293 + $0x8] sm:$0xff]
        %v296 = vld [vmem:[%s293 + $0x10] sm:$0xff]
        %v297 = vld [vmem:[%s293 + $0x18] sm:$0xff]
        %v298 = vlaneseq
        %vm299 = vcmp.ge.s32.totalorder %v298, 0
        %vm300 = vcmp.lt.s32.totalorder %v298, 256
        %vm301 = vmand %vm299, %vm300
        %302 = vst.msk [vmem:[#allocation2] ss:$8 sm:$0x3] %vm301, 0.0
        %303 = vst.msk [vmem:[#allocation2] ss:$8 sm:$0x0] %vm301, 0.0
        %s304 = scalar_lea.vmem [#allocation2], 33
        %305 = vst.msk [vmem:[%s304] ss:$8 sm:$0x3] %vm301, 0.0
        %306 = vst.msk [vmem:[%s304] ss:$8 sm:$0x0] %vm301, 0.0
        %vm311 = vcmask 1040384
        %v312 = vrot.slane %v294, 7
        %v313 = vrot.slane %v295, 7
        %v314 = vrot.slane %v296, 7
        %v315 = vsel %vm311, %v312, %v314
        %v316 = vrot.slane %v297, 7
        %v317 = vsel %vm311, %v313, %v316
        %324 = vst [vmem:[#allocation2] sm:$0xfe] %v312
        %325 = vst [vmem:[#allocation2 + $0x8] sm:$0xfe] %v313
        %326 = vst [vmem:[#allocation2 + $0x10] sm:$0xff] %v315
        %327 = vst [vmem:[#allocation2 + $0x18] sm:$0xff] %v317
        %328 = vst [vmem:[#allocation2 + $0x20] sm:$0x1] %v314
        %329 = vst [vmem:[#allocation2 + $0x28] sm:$0x1] %v316
        %v330 = vld [vmem:[#allocation2] sm:$0xff]
        %v331 = vld [vmem:[#allocation2 + $0x8] sm:$0xff]
        %v332 = vld [vmem:[#allocation2 + $0x10] sm:$0xff]
        %v333 = vld [vmem:[#allocation2 + $0x18] sm:$0xff]
        %v334 = vpack.c.bf16 %v332, %v330
        %v335 = vpack.c.bf16 %v333, %v331
        %v336 = vld [vmem:[#allocation3] sm:$0xff]
        %v337 = vld [vmem:[#allocation3 + $0x8] sm:$0xff]
        %v338 = vld [vmem:[#allocation3 + $0x10] sm:$0xff]
        %v339 = vld [vmem:[#allocation3 + $0x18] sm:$0xff]
        %v340 = vld [vmem:[#allocation3 + $0x20] sm:$0xff]
        %v341 = vld [vmem:[#allocation3 + $0x28] sm:$0xff]
        %v342 = vld [vmem:[#allocation3 + $0x30] sm:$0xff]
        %v343 = vld [vmem:[#allocation3 + $0x38] sm:$0xff]
        %v344 = vld [vmem:[#allocation3 + $0x40] sm:$0xff]
        %v345 = vld [vmem:[#allocation3 + $0x48] sm:$0xff]
        %v346 = vld [vmem:[#allocation3 + $0x50] sm:$0xff]
        %v347 = vld [vmem:[#allocation3 + $0x58] sm:$0xff]
        %v348 = vld [vmem:[#allocation3 + $0x60] sm:$0xff]
        %v349 = vld [vmem:[#allocation3 + $0x68] sm:$0xff]
        %v350 = vld [vmem:[#allocation3 + $0x70] sm:$0xff]
        %v351 = vld [vmem:[#allocation3 + $0x78] sm:$0xff]
        %v352 = vld [vmem:[#allocation3 + $0x80] sm:$0xff]
        %v353 = vld [vmem:[#allocation3 + $0x88] sm:$0xff]
        %v354 = vld [vmem:[#allocation3 + $0x90] sm:$0xff]
        %v355 = vld [vmem:[#allocation3 + $0x98] sm:$0xff]
        %v356 = vld [vmem:[#allocation3 + $0xa0] sm:$0xff]
        %v357 = vld [vmem:[#allocation3 + $0xa8] sm:$0xff]
        %v358 = vld [vmem:[#allocation3 + $0xb0] sm:$0xff]
        %v359 = vld [vmem:[#allocation3 + $0xb8] sm:$0xff]
        %v360 = vld [vmem:[#allocation3 + $0xc0] sm:$0xff]
        %v361 = vld [vmem:[#allocation3 + $0xc8] sm:$0xff]
        %v362 = vld [vmem:[#allocation3 + $0xd0] sm:$0xff]
        %v363 = vld [vmem:[#allocation3 + $0xd8] sm:$0xff]
        %v364 = vld [vmem:[#allocation3 + $0xe0] sm:$0xff]
        %v365 = vld [vmem:[#allocation3 + $0xe8] sm:$0xff]
        %v366 = vld [vmem:[#allocation3 + $0xf0] sm:$0xff]
        %v367 = vld [vmem:[#allocation3 + $0xf8] sm:$0xff]
        %v368 = vld [vmem:[#allocation2] sm:$0xfe]
        %v369 = vld [vmem:[#allocation2 + $0x8] sm:$0xfe]
        %v370 = vld [vmem:[#allocation2 + $0x20] sm:$0x1]
        %v371 = vld [vmem:[#allocation2 + $0x28] sm:$0x1]
        %v372 = vpack.c.bf16 %v332, %v368
        %v373 = vpack.c.bf16 %v333, %v369
        %v374 = vpack.c.bf16 %v370, %v370
        %v375 = vpack.c.bf16 %v371, %v371
        %s376 = scalar_lea.vmem [#allocation3], 256
        %v377 = vld [vmem:[%s376] sm:$0xff]
        %v378 = vld [vmem:[%s376 + $0x8] sm:$0xff]
        %v379 = vld [vmem:[%s376 + $0x10] sm:$0xff]
        %v380 = vld [vmem:[%s376 + $0x18] sm:$0xff]
        %v381 = vld [vmem:[%s376 + $0x20] sm:$0xff]
        %v382 = vld [vmem:[%s376 + $0x28] sm:$0xff]
        %v383 = vld [vmem:[%s376 + $0x30] sm:$0xff]
        %v384 = vld [vmem:[%s376 + $0x38] sm:$0xff]
        %v385 = vld [vmem:[%s376 + $0x40] sm:$0xff]
        %v386 = vld [vmem:[%s376 + $0x48] sm:$0xff]
        %v387 = vld [vmem:[%s376 + $0x50] sm:$0xff]
        %v388 = vld [vmem:[%s376 + $0x58] sm:$0xff]
        %v389 = vld [vmem:[%s376 + $0x60] sm:$0xff]
        %v390 = vld [vmem:[%s376 + $0x68] sm:$0xff]
        %v391 = vld [vmem:[%s376 + $0x70] sm:$0xff]
        %v392 = vld [vmem:[%s376 + $0x78] sm:$0xff]
        %v393 = vld [vmem:[%s376 + $0x80] sm:$0xff]
        %v394 = vld [vmem:[%s376 + $0x88] sm:$0xff]
        %v395 = vld [vmem:[%s376 + $0x90] sm:$0xff]
        %v396 = vld [vmem:[%s376 + $0x98] sm:$0xff]
        %v397 = vld [vmem:[%s376 + $0xa0] sm:$0xff]
        %v398 = vld [vmem:[%s376 + $0xa8] sm:$0xff]
        %v399 = vld [vmem:[%s376 + $0xb0] sm:$0xff]
        %v400 = vld [vmem:[%s376 + $0xb8] sm:$0xff]
        %v401 = vld [vmem:[%s376 + $0xc0] sm:$0xff]
        %v402 = vld [vmem:[%s376 + $0xc8] sm:$0xff]
        %v403 = vld [vmem:[%s376 + $0xd0] sm:$0xff]
        %v404 = vld [vmem:[%s376 + $0xd8] sm:$0xff]
        %v405 = vld [vmem:[%s376 + $0xe0] sm:$0xff]
        %v406 = vld [vmem:[%s376 + $0xe8] sm:$0xff]
        %v407 = vld [vmem:[%s376 + $0xf0] sm:$0xff]
        %v408 = vld [vmem:[%s376 + $0xf8] sm:$0xff]
        %vm409 = vsmask.f32 7424
        %v411 = vshrl.u32 %v372, 16
        %v413 = vshll.u32 %v372, 16
        %v415 = vrot.slane %v413, 1
        %v416 = vor.u32 %v411, %v415
        %v418 = vshll.u32 %v374, 16
        %v420 = vrot.slane %v418, 1
        %v421 = vsel %vm409, %v416, %v420
        %v423 = vshrl.u32 %v373, 16
        %v425 = vshll.u32 %v373, 16
        %v427 = vrot.slane %v425, 1
        %v428 = vor.u32 %v423, %v427
        %v430 = vshll.u32 %v375, 16
        %v432 = vrot.slane %v430, 1
        %v433 = vsel %vm409, %v428, %v432
        %v468 = vunpack.c.l.b16 %v377
        %v469 = vunpack.c.h.b16 %v377
        %v470 = vunpack.c.l.b16 %v378
        %v471 = vunpack.c.h.b16 %v378
        %v472 = vunpack.c.l.b16 %v379
        %v473 = vunpack.c.h.b16 %v379
        %v474 = vunpack.c.l.b16 %v380
        %v475 = vunpack.c.h.b16 %v380
        %v476 = vunpack.c.l.b16 %v381
        %v477 = vunpack.c.h.b16 %v381
        %v478 = vunpack.c.l.b16 %v382
        %v479 = vunpack.c.h.b16 %v382
        %v480 = vunpack.c.l.b16 %v383
        %v481 = vunpack.c.h.b16 %v383
        %v482 = vunpack.c.l.b16 %v384
        %v483 = vunpack.c.h.b16 %v384
        %v484 = vunpack.c.l.b16 %v385
        %v485 = vunpack.c.h.b16 %v385
        %v486 = vunpack.c.l.b16 %v386
        %v487 = vunpack.c.h.b16 %v386
        %v488 = vunpack.c.l.b16 %v387
        %v489 = vunpack.c.h.b16 %v387
        %v490 = vunpack.c.l.b16 %v388
        %v491 = vunpack.c.h.b16 %v388
        %v492 = vunpack.c.l.b16 %v389
        %v493 = vunpack.c.h.b16 %v389
        %v494 = vunpack.c.l.b16 %v390
        %v495 = vunpack.c.h.b16 %v390
        %v496 = vunpack.c.l.b16 %v391
        %v497 = vunpack.c.h.b16 %v391
        %v498 = vunpack.c.l.b16 %v392
        %v499 = vunpack.c.h.b16 %v392
        %v500 = vunpack.c.l.b16 %v393
        %v501 = vunpack.c.h.b16 %v393
        %v502 = vunpack.c.l.b16 %v394
        %v503 = vunpack.c.h.b16 %v394
        %v504 = vunpack.c.l.b16 %v395
        %v505 = vunpack.c.h.b16 %v395
        %v506 = vunpack.c.l.b16 %v396
        %v507 = vunpack.c.h.b16 %v396
        %v508 = vunpack.c.l.b16 %v397
        %v509 = vunpack.c.h.b16 %v397
        %v510 = vunpack.c.l.b16 %v398
        %v511 = vunpack.c.h.b16 %v398
        %v512 = vunpack.c.l.b16 %v399
        %v513 = vunpack.c.h.b16 %v399
        %v514 = vunpack.c.l.b16 %v400
        %v515 = vunpack.c.h.b16 %v400
        %v516 = vunpack.c.l.b16 %v401
        %v517 = vunpack.c.h.b16 %v401
        %v518 = vunpack.c.l.b16 %v402
        %v519 = vunpack.c.h.b16 %v402
        %v520 = vunpack.c.l.b16 %v403
        %v521 = vunpack.c.h.b16 %v403
        %v522 = vunpack.c.l.b16 %v404
        %v523 = vunpack.c.h.b16 %v404
        %v524 = vunpack.c.l.b16 %v405
        %v525 = vunpack.c.h.b16 %v405
        %v526 = vunpack.c.l.b16 %v406
        %v527 = vunpack.c.h.b16 %v406
        %v528 = vunpack.c.l.b16 %v407
        %v529 = vunpack.c.h.b16 %v407
        %v530 = vunpack.c.l.b16 %v408
        %v531 = vunpack.c.h.b16 %v408
        %v532 = vpack.c.b16 %v470, %v468
        %v533 = vpack.c.b16 %v471, %v469
        %v534 = vpack.c.b16 %v474, %v472
        %v535 = vpack.c.b16 %v475, %v473
        %v536 = vpack.c.b16 %v478, %v476
        %v537 = vpack.c.b16 %v479, %v477
        %v538 = vpack.c.b16 %v482, %v480
        %v539 = vpack.c.b16 %v483, %v481
        %v540 = vpack.c.b16 %v486, %v484
        %v541 = vpack.c.b16 %v487, %v485
        %v542 = vpack.c.b16 %v490, %v488
        %v543 = vpack.c.b16 %v491, %v489
        %v544 = vpack.c.b16 %v494, %v492
        %v545 = vpack.c.b16 %v495, %v493
        %v546 = vpack.c.b16 %v498, %v496
        %v547 = vpack.c.b16 %v499, %v497
        %v548 = vpack.c.b16 %v502, %v500
        %v549 = vpack.c.b16 %v503, %v501
        %v550 = vpack.c.b16 %v506, %v504
        %v551 = vpack.c.b16 %v507, %v505
        %v552 = vpack.c.b16 %v510, %v508
        %v553 = vpack.c.b16 %v511, %v509
        %v554 = vpack.c.b16 %v514, %v512
        %v555 = vpack.c.b16 %v515, %v513
        %v556 = vpack.c.b16 %v518, %v516
        %v557 = vpack.c.b16 %v519, %v517
        %v558 = vpack.c.b16 %v522, %v520
        %v559 = vpack.c.b16 %v523, %v521
        %v560 = vpack.c.b16 %v526, %v524
        %v561 = vpack.c.b16 %v527, %v525
        %v562 = vpack.c.b16 %v530, %v528
        %v563 = vpack.c.b16 %v531, %v529
        %596 = vmatpush.bf16.msra.mxu0 %v546
        %597 = vmatpush.bf16.msra.mxu0 %v544
        %598 = vmatpush.bf16.msra.mxu0 %v542
        %599 = vmatpush.bf16.msra.mxu0 %v540
        %600 = vmatpush.bf16.msra.mxu0 %v538
        %601 = vmatpush.bf16.msra.mxu0 %v536
        %602 = vmatpush.bf16.msra.mxu0 %v534
        %603 = vmatpush.bf16.msra.mxu0 %v532
        %604 = vmatmul.bf16.gmra.mxu0 %v421
        %v605 = vpop.f32.mrf.mxu0
        %v606 = vadd.f32 0.0, %v605
        %v607 = vpop.f32.mrf.mxu0
        %v608 = vadd.f32 0.0, %v607
        %609 = vdwg.mxu0
        %610 = vmatpush.bf16.msra.mxu0 %v562
        %611 = vmatpush.bf16.msra.mxu0 %v560
        %612 = vmatpush.bf16.msra.mxu0 %v558
        %613 = vmatpush.bf16.msra.mxu0 %v556
        %614 = vmatpush.bf16.msra.mxu0 %v554
        %615 = vmatpush.bf16.msra.mxu0 %v552
        %616 = vmatpush.bf16.msra.mxu0 %v550
        %617 = vmatpush.bf16.msra.mxu0 %v548
        %618 = vmatmul.bf16.gmra.mxu0 %v433
        %v619 = vpop.f32.mrf.mxu0
        %v620 = vadd.f32 %v606, %v619
        %v621 = vpop.f32.mrf.mxu0
        %v622 = vadd.f32 %v608, %v621
        %623 = vdwg.mxu0
        %624 = vmatpush.bf16.msra.mxu0 %v547
        %625 = vmatpush.bf16.msra.mxu0 %v545
        %626 = vmatpush.bf16.msra.mxu0 %v543
        %627 = vmatpush.bf16.msra.mxu0 %v541
        %628 = vmatpush.bf16.msra.mxu0 %v539
        %629 = vmatpush.bf16.msra.mxu0 %v537
        %630 = vmatpush.bf16.msra.mxu0 %v535
        %631 = vmatpush.bf16.msra.mxu0 %v533
        %632 = vmatmul.bf16.gmra.mxu0 %v421
        %v633 = vpop.f32.mrf.mxu0
        %v634 = vadd.f32 0.0, %v633
        %v635 = vpop.f32.mrf.mxu0
        %v636 = vadd.f32 0.0, %v635
        %637 = vdwg.mxu0
        %638 = vmatpush.bf16.msra.mxu0 %v563
        %639 = vmatpush.bf16.msra.mxu0 %v561
        %640 = vmatpush.bf16.msra.mxu0 %v559
        %641 = vmatpush.bf16.msra.mxu0 %v557
        %642 = vmatpush.bf16.msra.mxu0 %v555
        %643 = vmatpush.bf16.msra.mxu0 %v553
        %644 = vmatpush.bf16.msra.mxu0 %v551
        %645 = vmatpush.bf16.msra.mxu0 %v549
        %646 = vmatmul.bf16.gmra.mxu0 %v433
        %v647 = vpop.f32.mrf.mxu0
        %v648 = vadd.f32 %v634, %v647
        %v649 = vpop.f32.mrf.mxu0
        %v650 = vadd.f32 %v636, %v649
        %651 = vdwg.mxu0
        %v684 = vunpack.c.l.b16 %v336
        %v685 = vunpack.c.h.b16 %v336
        %v686 = vunpack.c.l.b16 %v337
        %v687 = vunpack.c.h.b16 %v337
        %v688 = vunpack.c.l.b16 %v338
        %v689 = vunpack.c.h.b16 %v338
        %v690 = vunpack.c.l.b16 %v339
        %v691 = vunpack.c.h.b16 %v339
        %v692 = vunpack.c.l.b16 %v340
        %v693 = vunpack.c.h.b16 %v340
        %v694 = vunpack.c.l.b16 %v341
        %v695 = vunpack.c.h.b16 %v341
        %v696 = vunpack.c.l.b16 %v342
        %v697 = vunpack.c.h.b16 %v342
        %v698 = vunpack.c.l.b16 %v343
        %v699 = vunpack.c.h.b16 %v343
        %v700 = vunpack.c.l.b16 %v344
        %v701 = vunpack.c.h.b16 %v344
        %v702 = vunpack.c.l.b16 %v345
        %v703 = vunpack.c.h.b16 %v345
        %v704 = vunpack.c.l.b16 %v346
        %v705 = vunpack.c.h.b16 %v346
        %v706 = vunpack.c.l.b16 %v347
        %v707 = vunpack.c.h.b16 %v347
        %v708 = vunpack.c.l.b16 %v348
        %v709 = vunpack.c.h.b16 %v348
        %v710 = vunpack.c.l.b16 %v349
        %v711 = vunpack.c.h.b16 %v349
        %v712 = vunpack.c.l.b16 %v350
        %v713 = vunpack.c.h.b16 %v350
        %v714 = vunpack.c.l.b16 %v351
        %v715 = vunpack.c.h.b16 %v351
        %v716 = vunpack.c.l.b16 %v352
        %v717 = vunpack.c.h.b16 %v352
        %v718 = vunpack.c.l.b16 %v353
        %v719 = vunpack.c.h.b16 %v353
        %v720 = vunpack.c.l.b16 %v354
        %v721 = vunpack.c.h.b16 %v354
        %v722 = vunpack.c.l.b16 %v355
        %v723 = vunpack.c.h.b16 %v355
        %v724 = vunpack.c.l.b16 %v356
        %v725 = vunpack.c.h.b16 %v356
        %v726 = vunpack.c.l.b16 %v357
        %v727 = vunpack.c.h.b16 %v357
        %v728 = vunpack.c.l.b16 %v358
        %v729 = vunpack.c.h.b16 %v358
        %v730 = vunpack.c.l.b16 %v359
        %v731 = vunpack.c.h.b16 %v359
        %v732 = vunpack.c.l.b16 %v360
        %v733 = vunpack.c.h.b16 %v360
        %v734 = vunpack.c.l.b16 %v361
        %v735 = vunpack.c.h.b16 %v361
        %v736 = vunpack.c.l.b16 %v362
        %v737 = vunpack.c.h.b16 %v362
        %v738 = vunpack.c.l.b16 %v363
        %v739 = vunpack.c.h.b16 %v363
        %v740 = vunpack.c.l.b16 %v364
        %v741 = vunpack.c.h.b16 %v364
        %v742 = vunpack.c.l.b16 %v365
        %v743 = vunpack.c.h.b16 %v365
        %v744 = vunpack.c.l.b16 %v366
        %v745 = vunpack.c.h.b16 %v366
        %v746 = vunpack.c.l.b16 %v367
        %v747 = vunpack.c.h.b16 %v367
        %v748 = vpack.c.b16 %v686, %v684
        %v749 = vpack.c.b16 %v687, %v685
        %v750 = vpack.c.b16 %v690, %v688
        %v751 = vpack.c.b16 %v691, %v689
        %v752 = vpack.c.b16 %v694, %v692
        %v753 = vpack.c.b16 %v695, %v693
        %v754 = vpack.c.b16 %v698, %v696
        %v755 = vpack.c.b16 %v699, %v697
        %v756 = vpack.c.b16 %v702, %v700
        %v757 = vpack.c.b16 %v703, %v701
        %v758 = vpack.c.b16 %v706, %v704
        %v759 = vpack.c.b16 %v707, %v705
        %v760 = vpack.c.b16 %v710, %v708
        %v761 = vpack.c.b16 %v711, %v709
        %v762 = vpack.c.b16 %v714, %v712
        %v763 = vpack.c.b16 %v715, %v713
        %v764 = vpack.c.b16 %v718, %v716
        %v765 = vpack.c.b16 %v719, %v717
        %v766 = vpack.c.b16 %v722, %v720
        %v767 = vpack.c.b16 %v723, %v721
        %v768 = vpack.c.b16 %v726, %v724
        %v769 = vpack.c.b16 %v727, %v725
        %v770 = vpack.c.b16 %v730, %v728
        %v771 = vpack.c.b16 %v731, %v729
        %v772 = vpack.c.b16 %v734, %v732
        %v773 = vpack.c.b16 %v735, %v733
        %v774 = vpack.c.b16 %v738, %v736
        %v775 = vpack.c.b16 %v739, %v737
        %v776 = vpack.c.b16 %v742, %v740
        %v777 = vpack.c.b16 %v743, %v741
        %v778 = vpack.c.b16 %v746, %v744
        %v779 = vpack.c.b16 %v747, %v745
        %812 = vmatpush.bf16.msra.mxu0 %v762
        %813 = vmatpush.bf16.msra.mxu0 %v760
        %814 = vmatpush.bf16.msra.mxu0 %v758
        %815 = vmatpush.bf16.msra.mxu0 %v756
        %816 = vmatpush.bf16.msra.mxu0 %v754
        %817 = vmatpush.bf16.msra.mxu0 %v752
        %818 = vmatpush.bf16.msra.mxu0 %v750
        %819 = vmatpush.bf16.msra.mxu0 %v748
        %820 = vmatmul.bf16.gmra.mxu0 %v334
        %v821 = vpop.f32.mrf.mxu0
        %v822 = vadd.f32 %v620, %v821
        %v823 = vpop.f32.mrf.mxu0
        %v824 = vadd.f32 %v622, %v823
        %825 = vdwg.mxu0
        %826 = vmatpush.bf16.msra.mxu0 %v778
        %827 = vmatpush.bf16.msra.mxu0 %v776
        %828 = vmatpush.bf16.msra.mxu0 %v774
        %829 = vmatpush.bf16.msra.mxu0 %v772
        %830 = vmatpush.bf16.msra.mxu0 %v770
        %831 = vmatpush.bf16.msra.mxu0 %v768
        %832 = vmatpush.bf16.msra.mxu0 %v766
        %833 = vmatpush.bf16.msra.mxu0 %v764
        %834 = vmatmul.bf16.gmra.mxu0 %v335
        %v835 = vpop.f32.mrf.mxu0
        %v836 = vadd.f32 %v822, %v835
        %v837 = vpop.f32.mrf.mxu0
        %v838 = vadd.f32 %v824, %v837
        %839 = vdwg.mxu0
        %840 = vmatpush.bf16.msra.mxu0 %v763
        %841 = vmatpush.bf16.msra.mxu0 %v761
        %842 = vmatpush.bf16.msra.mxu0 %v759
        %843 = vmatpush.bf16.msra.mxu0 %v757
        %844 = vmatpush.bf16.msra.mxu0 %v755
        %845 = vmatpush.bf16.msra.mxu0 %v753
        %846 = vmatpush.bf16.msra.mxu0 %v751
        %847 = vmatpush.bf16.msra.mxu0 %v749
        %848 = vmatmul.bf16.gmra.mxu0 %v334
        %v849 = vpop.f32.mrf.mxu0
        %v850 = vadd.f32 %v648, %v849
        %v851 = vpop.f32.mrf.mxu0
        %v852 = vadd.f32 %v650, %v851
        %853 = vdwg.mxu0
        %854 = vmatpush.bf16.msra.mxu0 %v779
        %855 = vmatpush.bf16.msra.mxu0 %v777
        %856 = vmatpush.bf16.msra.mxu0 %v775
        %857 = vmatpush.bf16.msra.mxu0 %v773
        %858 = vmatpush.bf16.msra.mxu0 %v771
        %859 = vmatpush.bf16.msra.mxu0 %v769
        %860 = vmatpush.bf16.msra.mxu0 %v767
        %861 = vmatpush.bf16.msra.mxu0 %v765
        %862 = vmatmul.bf16.gmra.mxu0 %v335
        %v863 = vpop.f32.mrf.mxu0
        %v864 = vadd.f32 %v850, %v863
        %v865 = vpop.f32.mrf.mxu0
        %v866 = vadd.f32 %v852, %v865
        %867 = vdwg.mxu0
        %v868 = vld [vmem:[#allocation2] sm:$0xfc]
        %v869 = vld [vmem:[#allocation2 + $0x8] sm:$0xfc]
        %v870 = vld [vmem:[#allocation2 + $0x20] sm:$0x3]
        %v871 = vld [vmem:[#allocation2 + $0x28] sm:$0x3]
        %v872 = vpack.c.bf16 %v332, %v868
        %v873 = vpack.c.bf16 %v333, %v869
        %v874 = vpack.c.bf16 %v870, %v870
        %v875 = vpack.c.bf16 %v871, %v871
        %s876 = scalar_lea.vmem [#allocation3], 512
        %v877 = vld [vmem:[%s876] sm:$0xff]
        %v878 = vld [vmem:[%s876 + $0x8] sm:$0xff]
        %v879 = vld [vmem:[%s876 + $0x10] sm:$0xff]
        %v880 = vld [vmem:[%s876 + $0x18] sm:$0xff]
        %v881 = vld [vmem:[%s876 + $0x20] sm:$0xff]
        %v882 = vld [vmem:[%s876 + $0x28] sm:$0xff]
        %v883 = vld [vmem:[%s876 + $0x30] sm:$0xff]
        %v884 = vld [vmem:[%s876 + $0x38] sm:$0xff]
        %v885 = vld [vmem:[%s876 + $0x40] sm:$0xff]
        %v886 = vld [vmem:[%s876 + $0x48] sm:$0xff]
        %v887 = vld [vmem:[%s876 + $0x50] sm:$0xff]
        %v888 = vld [vmem:[%s876 + $0x58] sm:$0xff]
        %v889 = vld [vmem:[%s876 + $0x60] sm:$0xff]
        %v890 = vld [vmem:[%s876 + $0x68] sm:$0xff]
        %v891 = vld [vmem:[%s876 + $0x70] sm:$0xff]
        %v892 = vld [vmem:[%s876 + $0x78] sm:$0xff]
        %v893 = vld [vmem:[%s876 + $0x80] sm:$0xff]
        %v894 = vld [vmem:[%s876 + $0x88] sm:$0xff]
        %v895 = vld [vmem:[%s876 + $0x90] sm:$0xff]
        %v896 = vld [vmem:[%s876 + $0x98] sm:$0xff]
        %v897 = vld [vmem:[%s876 + $0xa0] sm:$0xff]
        %v898 = vld [vmem:[%s876 + $0xa8] sm:$0xff]
        %v899 = vld [vmem:[%s876 + $0xb0] sm:$0xff]
        %v900 = vld [vmem:[%s876 + $0xb8] sm:$0xff]
        %v901 = vld [vmem:[%s876 + $0xc0] sm:$0xff]
        %v902 = vld [vmem:[%s876 + $0xc8] sm:$0xff]
        %v903 = vld [vmem:[%s876 + $0xd0] sm:$0xff]
        %v904 = vld [vmem:[%s876 + $0xd8] sm:$0xff]
        %v905 = vld [vmem:[%s876 + $0xe0] sm:$0xff]
        %v906 = vld [vmem:[%s876 + $0xe8] sm:$0xff]
        %v907 = vld [vmem:[%s876 + $0xf0] sm:$0xff]
        %v908 = vld [vmem:[%s876 + $0xf8] sm:$0xff]
        %vm913 = vcmask 1046528
        %v914 = vrot.slane %v872, 1
        %v915 = vrot.slane %v874, 1
        %v916 = vsel %vm913, %v914, %v915
        %v917 = vrot.slane %v873, 1
        %v918 = vrot.slane %v875, 1
        %v919 = vsel %vm913, %v917, %v918
        %v954 = vunpack.c.l.b16 %v877
        %v955 = vunpack.c.h.b16 %v877
        %v956 = vunpack.c.l.b16 %v878
        %v957 = vunpack.c.h.b16 %v878
        %v958 = vunpack.c.l.b16 %v879
        %v959 = vunpack.c.h.b16 %v879
        %v960 = vunpack.c.l.b16 %v880
        %v961 = vunpack.c.h.b16 %v880
        %v962 = vunpack.c.l.b16 %v881
        %v963 = vunpack.c.h.b16 %v881
        %v964 = vunpack.c.l.b16 %v882
        %v965 = vunpack.c.h.b16 %v882
        %v966 = vunpack.c.l.b16 %v883
        %v967 = vunpack.c.h.b16 %v883
        %v968 = vunpack.c.l.b16 %v884
        %v969 = vunpack.c.h.b16 %v884
        %v970 = vunpack.c.l.b16 %v885
        %v971 = vunpack.c.h.b16 %v885
        %v972 = vunpack.c.l.b16 %v886
        %v973 = vunpack.c.h.b16 %v886
        %v974 = vunpack.c.l.b16 %v887
        %v975 = vunpack.c.h.b16 %v887
        %v976 = vunpack.c.l.b16 %v888
        %v977 = vunpack.c.h.b16 %v888
        %v978 = vunpack.c.l.b16 %v889
        %v979 = vunpack.c.h.b16 %v889
        %v980 = vunpack.c.l.b16 %v890
        %v981 = vunpack.c.h.b16 %v890
        %v982 = vunpack.c.l.b16 %v891
        %v983 = vunpack.c.h.b16 %v891
        %v984 = vunpack.c.l.b16 %v892
        %v985 = vunpack.c.h.b16 %v892
        %v986 = vunpack.c.l.b16 %v893
        %v987 = vunpack.c.h.b16 %v893
        %v988 = vunpack.c.l.b16 %v894
        %v989 = vunpack.c.h.b16 %v894
        %v990 = vunpack.c.l.b16 %v895
        %v991 = vunpack.c.h.b16 %v895
        %v992 = vunpack.c.l.b16 %v896
        %v993 = vunpack.c.h.b16 %v896
        %v994 = vunpack.c.l.b16 %v897
        %v995 = vunpack.c.h.b16 %v897
        %v996 = vunpack.c.l.b16 %v898
        %v997 = vunpack.c.h.b16 %v898
        %v998 = vunpack.c.l.b16 %v899
        %v999 = vunpack.c.h.b16 %v899
        %v1000 = vunpack.c.l.b16 %v900
        %v1001 = vunpack.c.h.b16 %v900
        %v1002 = vunpack.c.l.b16 %v901
        %v1003 = vunpack.c.h.b16 %v901
        %v1004 = vunpack.c.l.b16 %v902
        %v1005 = vunpack.c.h.b16 %v902
        %v1006 = vunpack.c.l.b16 %v903
        %v1007 = vunpack.c.h.b16 %v903
        %v1008 = vunpack.c.l.b16 %v904
        %v1009 = vunpack.c.h.b16 %v904
        %v1010 = vunpack.c.l.b16 %v905
        %v1011 = vunpack.c.h.b16 %v905
        %v1012 = vunpack.c.l.b16 %v906
        %v1013 = vunpack.c.h.b16 %v906
        %v1014 = vunpack.c.l.b16 %v907
        %v1015 = vunpack.c.h.b16 %v907
        %v1016 = vunpack.c.l.b16 %v908
        %v1017 = vunpack.c.h.b16 %v908
        %v1018 = vpack.c.b16 %v956, %v954
        %v1019 = vpack.c.b16 %v957, %v955
        %v1020 = vpack.c.b16 %v960, %v958
        %v1021 = vpack.c.b16 %v961, %v959
        %v1022 = vpack.c.b16 %v964, %v962
        %v1023 = vpack.c.b16 %v965, %v963
        %v1024 = vpack.c.b16 %v968, %v966
        %v1025 = vpack.c.b16 %v969, %v967
        %v1026 = vpack.c.b16 %v972, %v970
        %v1027 = vpack.c.b16 %v973, %v971
        %v1028 = vpack.c.b16 %v976, %v974
        %v1029 = vpack.c.b16 %v977, %v975
        %v1030 = vpack.c.b16 %v980, %v978
        %v1031 = vpack.c.b16 %v981, %v979
        %v1032 = vpack.c.b16 %v984, %v982
        %v1033 = vpack.c.b16 %v985, %v983
        %v1034 = vpack.c.b16 %v988, %v986
        %v1035 = vpack.c.b16 %v989, %v987
        %v1036 = vpack.c.b16 %v992, %v990
        %v1037 = vpack.c.b16 %v993, %v991
        %v1038 = vpack.c.b16 %v996, %v994
        %v1039 = vpack.c.b16 %v997, %v995
        %v1040 = vpack.c.b16 %v1000, %v998
        %v1041 = vpack.c.b16 %v1001, %v999
        %v1042 = vpack.c.b16 %v1004, %v1002
        %v1043 = vpack.c.b16 %v1005, %v1003
        %v1044 = vpack.c.b16 %v1008, %v1006
        %v1045 = vpack.c.b16 %v1009, %v1007
        %v1046 = vpack.c.b16 %v1012, %v1010
        %v1047 = vpack.c.b16 %v1013, %v1011
        %v1048 = vpack.c.b16 %v1016, %v1014
        %v1049 = vpack.c.b16 %v1017, %v1015
        %1082 = vmatpush.bf16.msra.mxu0 %v1032
        %1083 = vmatpush.bf16.msra.mxu0 %v1030
        %1084 = vmatpush.bf16.msra.mxu0 %v1028
        %1085 = vmatpush.bf16.msra.mxu0 %v1026
        %1086 = vmatpush.bf16.msra.mxu0 %v1024
        %1087 = vmatpush.bf16.msra.mxu0 %v1022
        %1088 = vmatpush.bf16.msra.mxu0 %v1020
        %1089 = vmatpush.bf16.msra.mxu0 %v1018
        %1090 = vmatmul.bf16.gmra.mxu0 %v916
        %v1091 = vpop.f32.mrf.mxu0
        %v1092 = vadd.f32 0.0, %v1091
        %v1093 = vpop.f32.mrf.mxu0
        %v1094 = vadd.f32 0.0, %v1093
        %1095 = vdwg.mxu0
        %1096 = vmatpush.bf16.msra.mxu0 %v1048
        %1097 = vmatpush.bf16.msra.mxu0 %v1046
        %1098 = vmatpush.bf16.msra.mxu0 %v1044
        %1099 = vmatpush.bf16.msra.mxu0 %v1042
        %1100 = vmatpush.bf16.msra.mxu0 %v1040
        %1101 = vmatpush.bf16.msra.mxu0 %v1038
        %1102 = vmatpush.bf16.msra.mxu0 %v1036
        %1103 = vmatpush.bf16.msra.mxu0 %v1034
        %1104 = vmatmul.bf16.gmra.mxu0 %v919
        %v1105 = vpop.f32.mrf.mxu0
        %v1106 = vadd.f32 %v1092, %v1105
        %v1107 = vpop.f32.mrf.mxu0
        %v1108 = vadd.f32 %v1094, %v1107
        %1109 = vdwg.mxu0
        %1110 = vmatpush.bf16.msra.mxu0 %v1033
        %1111 = vmatpush.bf16.msra.mxu0 %v1031
        %1112 = vmatpush.bf16.msra.mxu0 %v1029
        %1113 = vmatpush.bf16.msra.mxu0 %v1027
        %1114 = vmatpush.bf16.msra.mxu0 %v1025
        %1115 = vmatpush.bf16.msra.mxu0 %v1023
        %1116 = vmatpush.bf16.msra.mxu0 %v1021
        %1117 = vmatpush.bf16.msra.mxu0 %v1019
        %1118 = vmatmul.bf16.gmra.mxu0 %v916
        %v1119 = vpop.f32.mrf.mxu0
        %v1120 = vadd.f32 0.0, %v1119
        %v1121 = vpop.f32.mrf.mxu0
        %v1122 = vadd.f32 0.0, %v1121
        %1123 = vdwg.mxu0
        %1124 = vmatpush.bf16.msra.mxu0 %v1049
        %1125 = vmatpush.bf16.msra.mxu0 %v1047
        %1126 = vmatpush.bf16.msra.mxu0 %v1045
        %1127 = vmatpush.bf16.msra.mxu0 %v1043
        %1128 = vmatpush.bf16.msra.mxu0 %v1041
        %1129 = vmatpush.bf16.msra.mxu0 %v1039
        %1130 = vmatpush.bf16.msra.mxu0 %v1037
        %1131 = vmatpush.bf16.msra.mxu0 %v1035
        %1132 = vmatmul.bf16.gmra.mxu0 %v919
        %v1133 = vpop.f32.mrf.mxu0
        %v1134 = vadd.f32 %v1120, %v1133
        %v1135 = vpop.f32.mrf.mxu0
        %v1136 = vadd.f32 %v1122, %v1135
        %1137 = vdwg.mxu0
        %v1138 = vadd.f32 %v836, %v1106
        %v1139 = vadd.f32 %v864, %v1134
        %v1140 = vadd.f32 %v838, %v1108
        %v1141 = vadd.f32 %v866, %v1136
        %v1142 = vld [vmem:[%s2] sm:$0x3]
        %v1144 = vperm.slane %v1142, 0
        %v1145 = vperm.slane %v1142, 1
        %v1148 = vadd.f32 %v1138, %v1144
        %v1149 = vadd.f32 %v1139, %v1145
        %v1150 = vadd.f32 %v1140, %v1144
        %v1151 = vadd.f32 %v1141, %v1145
        %v1152 = vadd.f32 %v1148, %v1150
        %v1153 = vrot.slane %v1152, 4
        %v1154 = vadd.f32 %v1152, %v1153
        %v1155 = vrot.slane %v1154, 2
        %v1156 = vadd.f32 %v1154, %v1155
        %v1157 = vrot.slane %v1156, 1
        %v1158 = vadd.f32 %v1156, %v1157
        %v1159 = vadd.f32 %v1149, %v1151
        %v1160 = vrot.slane %v1159, 4
        %v1161 = vadd.f32 %v1159, %v1160
        %v1162 = vrot.slane %v1161, 2
        %v1163 = vadd.f32 %v1161, %v1162
        %v1164 = vrot.slane %v1163, 1
        %v1165 = vadd.f32 %v1163, %v1164
        %v1166 = vmul.f32 %v1148, %v1148
        %v1167 = vmul.f32 %v1149, %v1149
        %v1168 = vmul.f32 %v1150, %v1150
        %v1169 = vmul.f32 %v1151, %v1151
        %v1170 = vadd.f32 %v1166, %v1168
        %v1171 = vrot.slane %v1170, 4
        %v1172 = vadd.f32 %v1170, %v1171
        %v1173 = vrot.slane %v1172, 2
        %v1174 = vadd.f32 %v1172, %v1173
        %v1175 = vrot.slane %v1174, 1
        %v1176 = vadd.f32 %v1174, %v1175
        %v1177 = vadd.f32 %v1167, %v1169
        %v1178 = vrot.slane %v1177, 4
        %v1179 = vadd.f32 %v1177, %v1178
        %v1180 = vrot.slane %v1179, 2
        %v1181 = vadd.f32 %v1179, %v1180
        %v1182 = vrot.slane %v1181, 1
        %v1183 = vadd.f32 %v1181, %v1182
        %v1184 = vsel %vm311, %v1158, %v1176
        %v1185 = vsel %vm311, %v1165, %v1183
        %v1186 = vld [vmem:[%s5] sm:$0xff]
        %v1187 = vld [vmem:[%s5 + $0x8] sm:$0xff]
        %v1188 = vld [vmem:[%s5 + $0x10] sm:$0xff]
        %v1189 = vld [vmem:[%s5 + $0x18] sm:$0xff]
        %v1190 = vld [vmem:[%s5 + $0x20] sm:$0xff]
        %v1191 = vld [vmem:[%s5 + $0x28] sm:$0xff]
        %v1192 = vld [vmem:[%s5 + $0x30] sm:$0xff]
        %v1193 = vld [vmem:[%s5 + $0x38] sm:$0xff]
        %v1194 = vld [vmem:[%s5 + $0x40] sm:$0xff]
        %v1195 = vld [vmem:[%s5 + $0x48] sm:$0xff]
        %v1196 = vld [vmem:[%s5 + $0x50] sm:$0xff]
        %v1197 = vld [vmem:[%s5 + $0x58] sm:$0xff]
        %v1198 = vld [vmem:[%s5 + $0x60] sm:$0xff]
        %v1199 = vld [vmem:[%s5 + $0x68] sm:$0xff]
        %v1200 = vld [vmem:[%s5 + $0x70] sm:$0xff]
        %v1201 = vld [vmem:[%s5 + $0x78] sm:$0xff]
        %v1202 = vld [vmem:[%s5 + $0x80] sm:$0xff]
        %v1203 = vld [vmem:[%s5 + $0x88] sm:$0xff]
        %v1204 = vld [vmem:[%s5 + $0x90] sm:$0xff]
        %v1205 = vld [vmem:[%s5 + $0x98] sm:$0xff]
        %v1206 = vld [vmem:[%s5 + $0xa0] sm:$0xff]
        %v1207 = vld [vmem:[%s5 + $0xa8] sm:$0xff]
        %v1208 = vld [vmem:[%s5 + $0xb0] sm:$0xff]
        %v1209 = vld [vmem:[%s5 + $0xb8] sm:$0xff]
        %v1210 = vld [vmem:[%s5 + $0xc0] sm:$0xff]
        %v1211 = vld [vmem:[%s5 + $0xc8] sm:$0xff]
        %v1212 = vld [vmem:[%s5 + $0xd0] sm:$0xff]
        %v1213 = vld [vmem:[%s5 + $0xd8] sm:$0xff]
        %v1214 = vld [vmem:[%s5 + $0xe0] sm:$0xff]
        %v1215 = vld [vmem:[%s5 + $0xe8] sm:$0xff]
        %v1216 = vld [vmem:[%s5 + $0xf0] sm:$0xff]
        %v1217 = vld [vmem:[%s5 + $0xf8] sm:$0xff]
        %1218 = vmatpush.msra.mxu0 %v1201
        %1219 = vmatpush.msra.mxu0 %v1200
        %1220 = vmatpush.msra.mxu0 %v1199
        %1221 = vmatpush.msra.mxu0 %v1198
        %1222 = vmatpush.msra.mxu0 %v1197
        %1223 = vmatpush.msra.mxu0 %v1196
        %1224 = vmatpush.msra.mxu0 %v1195
        %1225 = vmatpush.msra.mxu0 %v1194
        %1226 = vmatpush.msra.mxu0 %v1193
        %1227 = vmatpush.msra.mxu0 %v1192
        %1228 = vmatpush.msra.mxu0 %v1191
        %1229 = vmatpush.msra.mxu0 %v1190
        %1230 = vmatpush.msra.mxu0 %v1189
        %1231 = vmatpush.msra.mxu0 %v1188
        %1232 = vmatpush.msra.mxu0 %v1187
        %1233 = vmatpush.msra.mxu0 %v1186
        %1234 = vmatmul.f32.gmra.mxu0 %v1184
        %v1235 = vpop.f32.mrf.mxu0
        %v1236 = vadd.f32 0.0, %v1235
        %1237 = vdwg.mxu0
        %1238 = vmatpush.msra.mxu0 %v1217
        %1239 = vmatpush.msra.mxu0 %v1216
        %1240 = vmatpush.msra.mxu0 %v1215
        %1241 = vmatpush.msra.mxu0 %v1214
        %1242 = vmatpush.msra.mxu0 %v1213
        %1243 = vmatpush.msra.mxu0 %v1212
        %1244 = vmatpush.msra.mxu0 %v1211
        %1245 = vmatpush.msra.mxu0 %v1210
        %1246 = vmatpush.msra.mxu0 %v1209
        %1247 = vmatpush.msra.mxu0 %v1208
        %1248 = vmatpush.msra.mxu0 %v1207
        %1249 = vmatpush.msra.mxu0 %v1206
        %1250 = vmatpush.msra.mxu0 %v1205
        %1251 = vmatpush.msra.mxu0 %v1204
        %1252 = vmatpush.msra.mxu0 %v1203
        %1253 = vmatpush.msra.mxu0 %v1202
        %1254 = vmatmul.f32.gmra.mxu0 %v1185
        %v1255 = vpop.f32.mrf.mxu0
        %v1256 = vadd.f32 %v1236, %v1255
        %1257 = vdwg.mxu0
        %v1258 = vld [vmem:[%s6] sm:$0xff]
        %v1259 = vld [vmem:[%s6 + $0x8] sm:$0xff]
        %vm1260 = vcmask 64512
        %v1262 = vsel %vm1260, %v1256, 0
        %1264 = vmatpush.msra.mxu0 0.0
        %1265 = vmatpush.msra.mxu0 0.0
        %1266 = vmatpush.msra.mxu0 0.0
        %1267 = vmatpush.msra.mxu0 0.0
        %1268 = vmatpush.msra.mxu0 0.0
        %1269 = vmatpush.msra.mxu0 0.0
        %1270 = vmatpush.msra.mxu0 0.0
        %1271 = vmatpush.msra.mxu0 0.0
        %1272 = vmatpush.msra.mxu0 0.0
        %1273 = vmatpush.msra.mxu0 0.0
        %1274 = vmatpush.msra.mxu0 0.0
        %1275 = vmatpush.msra.mxu0 0.0
        %1276 = vmatpush.msra.mxu0 0.0
        %1277 = vmatpush.msra.mxu0 0.0
        %1278 = vmatpush.msra.mxu0 0.0
        %1279 = vmatpush.msra.mxu0 %v1258
        %1280 = vmatmul.f32.gmra.mxu0 %v1262
        %v1281 = vpop.f32.mrf.mxu0
        %v1282 = vadd.f32 0.0, %v1281
        %1283 = vdwg.mxu0
        %1284 = vmatpush.msra.mxu0 0.0
        %1285 = vmatpush.msra.mxu0 0.0
        %1286 = vmatpush.msra.mxu0 0.0
        %1287 = vmatpush.msra.mxu0 0.0
        %1288 = vmatpush.msra.mxu0 0.0
        %1289 = vmatpush.msra.mxu0 0.0
        %1290 = vmatpush.msra.mxu0 0.0
        %1291 = vmatpush.msra.mxu0 0.0
        %1292 = vmatpush.msra.mxu0 0.0
        %1293 = vmatpush.msra.mxu0 0.0
        %1294 = vmatpush.msra.mxu0 0.0
        %1295 = vmatpush.msra.mxu0 0.0
        %1296 = vmatpush.msra.mxu0 0.0
        %1297 = vmatpush.msra.mxu0 0.0
        %1298 = vmatpush.msra.mxu0 0.0
        %1299 = vmatpush.msra.mxu0 %v1259
        %1300 = vmatmul.f32.gmra.mxu0 %v1262
        %v1301 = vpop.f32.mrf.mxu0
        %v1302 = vadd.f32 0.0, %v1301
        %1303 = vdwg.mxu0
        %v1304 = vmul.f32 %v1282, %v1282
        %v1305 = vmul.f32 %v1302, %v1302
        %v1308 = vrot.slane %v1304, 7
        %v1309 = vrot.slane %v1305, 7
        %v1312 = vsub.f32 %v1282, %v1308
        %v1313 = vsub.f32 %v1302, %v1309
        %v1314 = vmax.f32 %v1312, 0.0
        %v1315 = vmax.f32 %v1313, 0.0
        %v1316 = vadd.f32 %v1314, 1e-05
        %v1317 = vadd.f32 %v1315, 1e-05
        %v1318 = vrsqrt.pop %v1316
        %v1319 = vmul.f32 %v1318, %v1316
        %v1320 = vmul.f32 %v1319, %v1318
        %v1321 = vmul.f32 0.5, %v1320
        %v1322 = vsub.f32 1.5, %v1321
        %v1323 = vmul.f32 %v1318, %v1322
        %vm1324 = vweird.f32 %v1316
        %vm1325 = vweird.f32 %v1318
        %vm1326 = vmor %vm1324, %vm1325
        %v1327 = vsel %vm1326, %v1318, %v1323
        %v1328 = vrsqrt.pop %v1317
        %v1329 = vmul.f32 %v1328, %v1317
        %v1330 = vmul.f32 %v1329, %v1328
        %v1331 = vmul.f32 0.5, %v1330
        %v1332 = vsub.f32 1.5, %v1331
        %v1333 = vmul.f32 %v1328, %v1332
        %vm1334 = vweird.f32 %v1317
        %vm1335 = vweird.f32 %v1328
        %vm1336 = vmor %vm1334, %vm1335
        %v1337 = vsel %vm1336, %v1328, %v1333
        %v1338 = vld [vmem:[%s3] sm:$0x3]
        %v1340 = vperm.slane %v1338, 0
        %v1341 = vperm.slane %v1338, 1
        %v1344 = vmul.f32 %v1327, %v1340
        %v1345 = vmul.f32 %v1337, %v1341
        %v1346 = vld [vmem:[%s4] sm:$0x3]
        %v1349 = vrot.slane %v1344, 1
        %v1350 = vrot.slane %v1345, 1
        %v1353 = vmul.f32 %v1282, %v1349
        %v1354 = vmul.f32 %v1302, %v1350
        %v1357 = vrot.slane %v1354, 7
        %v1358 = vsel %vm311, %v1353, %v1357
        %v1360 = vsub.f32 %v1346, %v1358
        %v1361 = vperm.slane %v1344, 1
        %v1362 = vperm.slane %v1345, 1
        %v1363 = vmul.f32 %v1148, %v1361
        %v1364 = vmul.f32 %v1149, %v1362
        %v1365 = vmul.f32 %v1150, %v1361
        %v1366 = vmul.f32 %v1151, %v1362
        %v1368 = vperm.slane %v1360, 0
        %v1369 = vperm.slane %v1360, 1
        %v1372 = vadd.f32 %v1363, %v1368
        %v1373 = vadd.f32 %v1364, %v1369
        %v1374 = vadd.f32 %v1365, %v1368
        %v1375 = vadd.f32 %v1366, %v1369
        %v1376 = vmul.f32 %v1372, 0.1
        %v1377 = vmul.f32 %v1373, 0.1
        %v1378 = vmul.f32 %v1374, 0.1
        %v1379 = vmul.f32 %v1375, 0.1
        %v1380 = vmax.f32 %v1372, %v1376
        %v1381 = vmax.f32 %v1373, %v1377
        %v1382 = vmax.f32 %v1374, %v1378
        %v1383 = vmax.f32 %v1375, %v1379
        %v1384 = vadd.f32 %v294, %v1380
        %v1385 = vadd.f32 %v295, %v1381
        %v1386 = vadd.f32 %v296, %v1382
        %v1387 = vadd.f32 %v297, %v1383
        %1388 = vst [vmem:[%s288] sm:$0xff] %v1384
        %1389 = vst [vmem:[%s288 + $0x8] sm:$0xff] %v1385
        %1390 = vst [vmem:[%s288 + $0x10] sm:$0xff] %v1386
        %1391 = vst [vmem:[%s288 + $0x18] sm:$0xff] %v1387
        %s1392 = sand.u32 %s182, 1
        %s1393 = scalar_lea.sflag [#allocation5], %s1392
        %s1394 = sand.u32 %s182, 1
        %s1395 = smul.addr %s1394, 32
        %s1396 = scalar_lea.vmem [#allocation6], %s1395
        // Predicated region
        $region53: #{tpu_custom_call.1} parent=47 // pred_check
          %p1397 = pneg %p192
        $region54: #{tpu_custom_call.1} parent=47 // pred_check_branch
          %1399 = sbr.rel (%p1397) target = $region56
        $region55: #{tpu_custom_call.1} parent=47 // pred_region
          %1401 = vsyncadd %s1393, 0
          %s1402 = smul.addr %s22, 4
          %s1403 = smul.addr %s1402, 8
          %s1404 = scalar_lea.hbm %s7, %s1403
          %s1405 = sshll.u32 %s1396, 4
          %s1406 = int_to_ptr.vmem [resolvable:$true] %s1405
          %s1407 = sshll.u32 %s1404, 4
          %s1408 = int_to_ptr.hbm [resolvable:$true] %s1407
          %1413 = dma.vmem_to_hbm [thread:$0]  %s1406, 512, %s1408, %s1393, 256, 256, 16
        $region56: #{tpu_custom_call.1} parent=47 // pred_fallthru
          _
      $region48: #{tpu_custom_call.1} parent=5 // pred_fallthru
        _
      %p1414 = scmp.le.s32.totalorder 2, %s17
      // Predicated region
      $region57: #{tpu_custom_call.1} parent=5 // pred_check
        %p1415 = pneg %p1414
      $region58: #{tpu_custom_call.1} parent=5 // pred_check_branch
        %1417 = sbr.rel (%p1415) target = $region60
      $region59: #{tpu_custom_call.1} parent=5 // pred_region
        %s1418 = ssub.s32 %s17, 2
        // Predicated region
        $region61: #{tpu_custom_call.1} parent=59 // pred_check
          %p1419 = pneg %p198
        $region62: #{tpu_custom_call.1} parent=59 // pred_check_branch
          %1421 = sbr.rel (%p1419) target = $region64
        $region63: #{tpu_custom_call.1} parent=59 // pred_region
          %s1422 = sand.u32 %s183, 1
          %s1423 = scalar_lea.sflag [#allocation5], %s1422
          %s1424 = sand.u32 %s183, 1
          %s1425 = smul.addr %s1424, 32
          %s1426 = scalar_lea.vmem [#allocation6], %s1425
          %1428 = dma.done %s1423, 512
        $region64: #{tpu_custom_call.1} parent=59 // pred_fallthru
          _
      $region60: #{tpu_custom_call.1} parent=5 // pred_fallthru
        _
    $region6: #{tpu_custom_call.1} parent=1 // loop_footer
      %s21 = sadd.s32 1, %s17
    $region7: #{tpu_custom_call.1} parent=1 // loop_footer_branch
      %16 = sbr.rel target = $region3
    $region8: #{tpu_custom_call.1} parent=1 // loop_exit
      _
    %1429 = vsyncpa [#allocation4], 1
    %s1430 = scalar_lea.sflag [#allocation4], 1
    %1431 = vsyncpa %s1430, 1
    %1432 = vsyncpa [#allocation5], 1
    %s1433 = scalar_lea.sflag [#allocation5], 1
    %1434 = vsyncpa %s1433, 1

</llo_original>
